<compile_context>
chip_gen: v7x
topology: tpu7x:2x2x1
jax: 0.10.0
libtpu: 0.0.40
codegen_flags: <defaults>
</compile_context>

<pallas_src>
import jax
import jax.numpy as jnp
from jax.experimental import pallas as pl
from jax.experimental.pallas import tpu as pltpu

LANES = 128        # vreg lane width
SUBLANES = 8       # f32 sublane packing
TILE_ROWS = 4096   # rows of 128 lanes per grid step -> 2 MiB f32 per block


def _round_up(x, m):
    return ((x + m - 1) // m) * m


def _linear_kernel(wb_ref, x_ref, o_ref):
    # wb_ref: (2,) f32 in SMEM -> [weight, bias]; x_ref/o_ref: (tile_rows, 128) in VMEM.
    w = wb_ref[0]
    b = wb_ref[1]
    y = x_ref[...].astype(jnp.float32) * w + b      # VPU mul-add in f32
    o_ref[...] = y.astype(o_ref.dtype)


def linear_forward(x, weight, bias):
    """nn.Linear(1, 1): x (B, 1), weight (1, 1) (PyTorch layout), bias (1,) -> (B, 1)."""
    B, F = x.shape
    assert F == 1 and weight.shape == (1, 1) and bias.shape == (1,)
    dtype = x.dtype

    # ---- lane-dense view: (B, 1) -> (rows, 128) ------------------------------
    flat = x.reshape(-1)
    n = flat.shape[0]
    rows = max(pl.cdiv(n, LANES), 1)
    padded = rows * LANES != n
    if padded:
        # Ragged path only: pad to the next multiple of LANES (never to a tile).
        flat = jnp.pad(flat, (0, rows * LANES - n))
    x2d = flat.reshape(rows, LANES)

    # ---- tile selection -------------------------------------------------------
    if rows < 2 * SUBLANES:
        # Tiny input: a single full-array block is always a legal block shape.
        tile_rows = rows
    else:
        # >= 2 grid steps (keeps both v7x TensorCores busy), tile rows a multiple
        # of the f32 sublane packing, capped at TILE_ROWS (2 MiB f32 per block).
        tile_rows = min(TILE_ROWS, _round_up(pl.cdiv(rows, 2), SUBLANES))
    grid = (pl.cdiv(rows, tile_rows),)   # ragged last block handled by Pallas

    # Scalar params as one flat f32 SMEM array (no 2-D SMEM padding, f32 compute).
    wb = jnp.concatenate([weight.reshape(1), bias.reshape(1)]).astype(jnp.float32)

    out2d = pl.pallas_call(
        _linear_kernel,
        out_shape=jax.ShapeDtypeStruct((rows, LANES), dtype),
        grid_spec=pltpu.PrefetchScalarGridSpec(
            num_scalar_prefetch=0,
            grid=grid,
            in_specs=[
                pl.BlockSpec(memory_space=pltpu.MemorySpace.SMEM),
                pl.BlockSpec((tile_rows, LANES), lambda i: (i, 0)),
            ],
            out_specs=pl.BlockSpec((tile_rows, LANES), lambda i: (i, 0)),
        ),
        compiler_params=pltpu.CompilerParams(
            dimension_semantics=("parallel",),
            vmem_limit_bytes=32 * 1024 * 1024,   # v5e guard (default scoped limit is 16 MiB)
        ),
    )(wb, x2d)

    if padded:
        return out2d.reshape(-1)[:n].reshape(B, 1)
    # Aligned fast path: pure reshape, no extra HBM pass.
    return out2d.reshape(B, 1)


if __name__ == "__main__":
    key = jax.random.PRNGKey(0)
    kx, kw, kb, kx2, kx3 = jax.random.split(key, 5)

    # Deterministic parameters (mimics nn.Linear's U(-1/sqrt(fan_in), 1/sqrt(fan_in)), fan_in=1).
    weight = jax.random.uniform(kw, (1, 1), jnp.float32, minval=-1.0, maxval=1.0)
    bias = jax.random.uniform(kb, (1,), jnp.float32, minval=-1.0, maxval=1.0)

    # Small ragged batch consistent with the module's (batch, 1) input: pad/slice path.
    x = jax.random.normal(kx, (8, 1), jnp.float32)
    y = jax.block_until_ready(linear_forward(x, weight, bias))
    y_ref = x @ weight.T + bias
    assert y.shape == (8, 1)
    assert jnp.allclose(y, y_ref, atol=1e-6, rtol=1e-6), (y, y_ref)

    # Lane-aligned batch: fast path (no pad, no slice), single block.
    x2 = jax.random.normal(kx2, (256, 1), jnp.float32)
    y2 = jax.block_until_ready(linear_forward(x2, weight, bias))
    assert y2.shape == (256, 1)
    assert jnp.allclose(y2, x2 @ weight.T + bias, atol=1e-6, rtol=1e-6)

    # Lane-aligned, multi-block path (rows=20 -> 2 grid steps, ragged last block).
    x3 = jax.random.normal(kx3, (2560, 1), jnp.float32)
    y3 = jax.block_until_ready(linear_forward(x3, weight, bias))
    assert y3.shape == (2560, 1)
    assert jnp.allclose(y3, x3 @ weight.T + bias, atol=1e-6, rtol=1e-6)

    print("KERNEL_OK")
</pallas_src>

<mosaic_0001>
module attributes {stable_mosaic.version = 11 : i64} {
  func.func @_linear_kernel(%arg0: i32, %arg1: memref<2xf32, #tpu.memory_space<smem>>, %arg2: memref<1x128xf32, #tpu.memory_space<vmem>>, %arg3: memref<1x128xf32, #tpu.memory_space<vmem>>) attributes {dimension_semantics = [#tpu.dimension_semantics<parallel>], iteration_bounds = array<i64: 1>, scalar_prefetch = 0 : i64, scratch_operands = 0 : i64, tpu.core_type = #tpu.core_type<tc>, window_params = [{transform_indices = @transform_0, window_bounds = array<i64: 2>}, {transform_indices = @transform_1, window_bounds = array<i64: 1, 128>}, {transform_indices = @transform_2, window_bounds = array<i64: 1, 128>}]} {
    %c0 = arith.constant 0 : index
    %0 = memref.load %arg1[%c0] : memref<2xf32, #tpu.memory_space<smem>>
    %c1 = arith.constant 1 : index
    %1 = memref.load %arg1[%c1] : memref<2xf32, #tpu.memory_space<smem>>
    %c0_0 = arith.constant 0 : index
    %c0_1 = arith.constant 0 : index
    %2 = vector.load %arg2[%c0_0, %c0_1] : memref<1x128xf32, #tpu.memory_space<vmem>>, vector<1x128xf32>
    %3 = vector.broadcast %0 : f32 to vector<1x128xf32>
    %4 = arith.mulf %2, %3 : vector<1x128xf32>
    %5 = vector.broadcast %1 : f32 to vector<1x128xf32>
    %6 = arith.addf %4, %5 : vector<1x128xf32>
    %c0_2 = arith.constant 0 : index
    %c0_3 = arith.constant 0 : index
    %7 = vector.load %arg3[%c0_2, %c0_3] : memref<1x128xf32, #tpu.memory_space<vmem>>, vector<1x128xf32>
    tpu.vector_store %arg3[%c0_2, %c0_3], %6 {strides = array<i32>} : memref<1x128xf32, #tpu.memory_space<vmem>>, vector<1x128xf32>,
    return
  }
  func.func @transform_0(%arg0: i32) -> i32 {
    %c0_i32 = arith.constant 0 : i32
    %c0_i32_0 = arith.constant 0 : i32
    return %c0_i32 : i32
  }
  func.func @transform_1(%arg0: i32) -> (i32, i32) {
    %c0_i32 = arith.constant 0 : i32
    %c0_i32_0 = arith.constant 0 : i32
    return %arg0, %c0_i32 : i32, i32
  }
  func.func @transform_2(%arg0: i32) -> (i32, i32) {
    %c0_i32 = arith.constant 0 : i32
    %c0_i32_0 = arith.constant 0 : i32
    return %arg0, %c0_i32 : i32, i32
  }
}

</mosaic_0001>

<llo_original>
// kernel: tpu_custom_call.1
$region0: #{tpu_custom_call.1}
  #allocation0 [shape = 'u32[]', space=smem, size = 0x4, offset = 0x4, fixed_abs, tag = 'smem constant byte address 0x4 - core index']
  #allocation1 [shape = 'u32[144,128]{1,0:T(1,128)}', space=vmem, size = 0x12000, scoped, tag = 'internal scratch']
  %s0 = inlined_call_operand.hbm [shape: f32[2], index: 0, kind: input, shape index: {}]
  %s1 = inlined_call_operand.vmem [shape: f32[1,128], index: 1, kind: input, shape index: {}]
  %s2 = inlined_call_operand.hbm [shape: f32[1,128], index: 2, kind: output, shape index: {}]
  %s3 = sld [smem:[#allocation0]]
  $region22: #{tpu_custom_call.1} parent=0
    _
  %s5 = ssub.s32 1, %s3
  %s6 = scalar_select 0, %s5, %s3
  $region1: #{tpu_custom_call.1} parent=0
    #allocation2 [shape = 'u8[512]{0}', space=smem, size = 0x200, scoped, tag = 'input window, operand 0, single buffered']
    #allocation3 [shape = 's32[1]{0}', space=sflag, size = 0x4, scoped, tag = 'scoped memory for tpu_custom_call.1']
    #allocation4 [shape = 's32[1]{0}', space=sflag, size = 0x4, scoped, tag = 'scoped memory for tpu_custom_call.1']
    #allocation5 [shape = 'u8[512]{0}', space=vmem, size = 0x400, scoped, tag = 'output window, operand 0, single buffered']
    %7 = vsyncpa [#allocation4], 0
    %8 = vsyncpa [#allocation3], 0
    // Predicated region
    $region2: #{tpu_custom_call.1} parent=1 // pred_check
      _
    $region3: #{tpu_custom_call.1} parent=1 // pred_check_branch
      %10 = sbr.rel (0) target = $region5
    $region4: #{tpu_custom_call.1} parent=1 // pred_region
      %s12 = ssub.s32 16, 16
      %13 = vsyncadd [#allocation4], %s12
      %16 = dma.hbm_to_smem %s0, 16, [#allocation2], [#allocation4]
    $region5: #{tpu_custom_call.1} parent=1 // pred_fallthru
      _
    // Predicated region
    $region6: #{tpu_custom_call.1} parent=1 // pred_check
      _
    $region7: #{tpu_custom_call.1} parent=1 // pred_check_branch
      %18 = sbr.rel (0) target = $region9
    $region8: #{tpu_custom_call.1} parent=1 // pred_region
      _
    $region9: #{tpu_custom_call.1} parent=1 // pred_fallthru
      _
    // Predicated region
    $region10: #{tpu_custom_call.1} parent=1 // pred_check
      _
    $region11: #{tpu_custom_call.1} parent=1 // pred_check_branch
      %20 = sbr.rel (0) target = $region13
    $region12: #{tpu_custom_call.1} parent=1 // pred_region
      %21 = dma.done [#allocation4], 16
    $region13: #{tpu_custom_call.1} parent=1 // pred_fallthru
      _
    %22 = sfence
    %s23 = sld [smem:[#allocation2]]
    %s24 = sld [smem:[#allocation2 + $0x1]]
    %v25 = vld [vmem:[%s1] sm:$0x1]
    %v26 = vstv %s23
    %v27 = vmul.f32 %v25, %v26
    %v28 = vstv %s24
    %v29 = vadd.f32 %v27, %v28
    %30 = vst [vmem:[#allocation5] sm:$0x1] %v29
    // Predicated region
    $region14: #{tpu_custom_call.1} parent=1 // pred_check
      _
    $region15: #{tpu_custom_call.1} parent=1 // pred_check_branch
      %32 = sbr.rel (0) target = $region17
    $region16: #{tpu_custom_call.1} parent=1 // pred_region
      %s34 = ssub.s32 16, 16
      %35 = vsyncadd [#allocation3], %s34
      %s37 = sshll.u32 [#allocation5], 4
      %s38 = int_to_ptr.vmem [resolvable:$true] %s37
      %40 = dma.vmem_to_hbm [thread:$0]  %s38, 16, %s2, [#allocation3]
    $region17: #{tpu_custom_call.1} parent=1 // pred_fallthru
      _
    // Predicated region
    $region18: #{tpu_custom_call.1} parent=1 // pred_check
      _
    $region19: #{tpu_custom_call.1} parent=1 // pred_check_branch
      %42 = sbr.rel (0) target = $region21
    $region20: #{tpu_custom_call.1} parent=1 // pred_region
      %43 = dma.done [#allocation3], 16
    $region21: #{tpu_custom_call.1} parent=1 // pred_fallthru
      _
    %44 = vsyncpa [#allocation3], 1
    %45 = vsyncpa [#allocation4], 1

</llo_original>
